<compile_context>
chip_gen: v5e
topology: v5e:2x2
jax: 0.10.0
libtpu: 0.0.40
codegen_flags: <defaults>
</compile_context>

<pallas_src>
from functools import partial

import jax
import jax.numpy as jnp
from jax.experimental import pallas as pl
from jax.experimental.pallas import tpu as pltpu


def _round_up(x, m):
    return (x + m - 1) // m * m


def _ordinal_loss_kernel(cut_ref, pred_ref, label_ref, acc_ref, *,
                         n_cls, eps, n_rows, n_cols, tile_rows, blocks_per_par):
    p = pl.program_id(0)   # parallel partition
    i = pl.program_id(1)   # reduction axis within the partition

    # Zero the per-partition resident accumulator at the start of the reduction axis.
    @pl.when(i == 0)
    def _():
        acc_ref[...] = jnp.zeros_like(acc_ref)

    pred = pred_ref[...].astype(jnp.float32)      # (tile_rows, N_pad)
    label = label_ref[...].astype(jnp.int32)      # widen int8 -> int32 in-register

    n_cut = n_cls - 1
    # Hoist the scalar cutpoint reads out of the per-class expressions.
    cuts = [cut_ref[c] for c in range(n_cut)]
    sig = [jax.nn.sigmoid(cuts[c] - pred) for c in range(n_cut)]      # EUP

    # Select the per-class likelihood with VPU selects, then clip + log ONCE.
    lk = sig[0]                                                       # class 0
    for c in range(1, n_cls):
        lk_c = (1.0 - sig[n_cut - 1]) if c == n_cls - 1 else (sig[c] - sig[c - 1])
        lk = jnp.where(label == c, lk_c, lk)
    log_lk = jnp.log(jnp.clip(lk, jnp.float32(eps), jnp.float32(1.0 - eps)))

    # Zero the padded rows / cols so they don't contribute to the sum.
    row0 = (p * blocks_per_par + i) * tile_rows
    rows = row0 + jax.lax.broadcasted_iota(jnp.int32, log_lk.shape, 0)
    cols = jax.lax.broadcasted_iota(jnp.int32, log_lk.shape, 1)
    log_lk = jnp.where((rows < n_rows) & (cols < n_cols), log_lk, jnp.float32(0.0))

    # Elementwise partial-sum into the vreg-shaped accumulator (VPU adds only).
    # Reshape splits the sublane dim into aligned (8)-row slabs: layout-free.
    g = log_lk.reshape(tile_rows // 8, 8, log_lk.shape[-1])
    acc_ref[...] += jnp.sum(g, axis=0)


def ordinal_regression_loss2(pred, label, cutpoints, *, eps=1e-8,
                             tile_rows=512, num_par=2):
    """pred: (B, N) float, label: (B, N) int in [0, n_cls), cutpoints: (n_cls-1,) f32."""
    B, N = pred.shape
    n_cls = cutpoints.shape[0] + 1
    assert n_cls <= 127, "int8 label path assumes a small number of classes"

    # Lane padding: N up to a multiple of 128.
    N_pad = _round_up(N, 128)

    # Row tile: multiple of 32 (int8 (32,128) tiling), capped at ~4 MiB of f32
    # per pred block so 2 inputs x 2 pipeline buffers fit comfortably even on
    # v7x's 64 MiB VMEM; also no bigger than one parallel partition's share.
    vmem_cap_rows = max(32, (4 * 1024 * 1024 // (4 * N_pad)) // 32 * 32)
    tile_rows = max(32, min(_round_up(tile_rows, 32), vmem_cap_rows))
    tile_rows = min(tile_rows, _round_up(pl.cdiv(B, num_par), 32))

    total_blocks = pl.cdiv(B, tile_rows)
    num_par = max(1, min(num_par, total_blocks))
    blocks_per_par = pl.cdiv(total_blocks, num_par)
    B_pad = num_par * blocks_per_par * tile_rows

    pred_p = pred.astype(jnp.float32)
    label_p = label.astype(jnp.int8)          # 4x less HBM read for labels
    if (B_pad, N_pad) != (B, N):
        pred_p = jnp.pad(pred_p, ((0, B_pad - B), (0, N_pad - N)))
        label_p = jnp.pad(label_p, ((0, B_pad - B), (0, N_pad - N)))

    kernel = partial(_ordinal_loss_kernel, n_cls=n_cls, eps=eps,
                     n_rows=B, n_cols=N, tile_rows=tile_rows,
                     blocks_per_par=blocks_per_par)

    partials = pl.pallas_call(
        kernel,
        out_shape=jax.ShapeDtypeStruct((num_par, 8, N_pad), jnp.float32),
        grid=(num_par, blocks_per_par),
        in_specs=[
            pl.BlockSpec(memory_space=pltpu.SMEM),                     # cutpoints
            pl.BlockSpec((tile_rows, N_pad),
                         lambda p, i: (p * blocks_per_par + i, 0)),    # pred tile
            pl.BlockSpec((tile_rows, N_pad),
                         lambda p, i: (p * blocks_per_par + i, 0)),    # label tile
        ],
        # One resident (8, N_pad) accumulator per parallel partition.
        out_specs=pl.BlockSpec((None, 8, N_pad), lambda p, i: (p, 0, 0)),
        compiler_params=pltpu.CompilerParams(
            dimension_semantics=("parallel", "arbitrary"),
            vmem_limit_bytes=32 * 1024 * 1024,
        ),
    )(cutpoints.astype(jnp.float32), pred_p, label_p)

    # Single final reduction + normalization (pairwise, in XLA).
    return -jnp.sum(partials) / jnp.float32(B * N)


def _reference_loss(pred, label, cutpoints, eps=1e-8):
    # Pure-JAX reference mirroring the PyTorch forward exactly.
    sig = jax.nn.sigmoid(cutpoints - pred[..., None])
    link = jnp.concatenate(
        [sig[..., :1], sig[..., 1:] - sig[..., :-1], 1.0 - sig[..., -1:]], axis=-1
    )
    lk = jnp.clip(link, eps, 1.0 - eps)
    nll = jnp.log(lk)
    gathered = jnp.take_along_axis(nll, label[..., None], axis=-1)
    return -jnp.mean(gathered)


if __name__ == "__main__":
    n_cls = 5
    # nn.Parameter(torch.linspace(0, 3, n_cls - 1)) equivalent.
    cutpoints = jnp.linspace(0.0, 3.0, n_cls - 1, dtype=jnp.float32)
    key = jax.random.PRNGKey(0)

    # Small test: 16 samples x 128 scores (exactly lane-aligned, single tile).
    k1, k2, k3, k4 = jax.random.split(key, 4)
    pred_s = jax.random.normal(k1, (16, 128), dtype=jnp.float32) * 1.5 + 1.0
    label_s = jax.random.randint(k2, (16, 128), 0, n_cls, dtype=jnp.int32)
    loss_s = jax.block_until_ready(ordinal_regression_loss2(pred_s, label_s, cutpoints))
    ref_s = _reference_loss(pred_s, label_s, cutpoints)
    assert jnp.allclose(loss_s, ref_s, rtol=1e-4, atol=1e-5), (loss_s, ref_s)

    # Larger ragged test: exercises row/col padding, multi-tile reduction and
    # the parallel partition axis.
    pred_l = jax.random.normal(k3, (600, 200), dtype=jnp.float32) * 1.5 + 1.0
    label_l = jax.random.randint(k4, (600, 200), 0, n_cls, dtype=jnp.int32)
    loss_l = jax.block_until_ready(ordinal_regression_loss2(pred_l, label_l, cutpoints))
    ref_l = _reference_loss(pred_l, label_l, cutpoints)
    assert jnp.allclose(loss_l, ref_l, rtol=1e-4, atol=1e-5), (loss_l, ref_l)

    print("KERNEL_OK")
</pallas_src>

<mosaic_0001>
module attributes {stable_mosaic.version = 11 : i64} {
  func.func @_ordinal_loss_kernel(%arg0: i32, %arg1: i32, %arg2: memref<4xf32, #tpu.memory_space<smem>>, %arg3: memref<32x128xf32, #tpu.memory_space<vmem>>, %arg4: memref<32x128xi8, #tpu.memory_space<vmem>>, %arg5: memref<1x8x128xf32, #tpu.memory_space<vmem>>) attributes {dimension_semantics = [#tpu.dimension_semantics<parallel>, #tpu.dimension_semantics<arbitrary>], iteration_bounds = array<i64: 1, 1>, scalar_prefetch = 0 : i64, scratch_operands = 0 : i64, tpu.core_type = #tpu.core_type<tc>, window_params = [{transform_indices = @transform_0, window_bounds = array<i64: 4>}, {transform_indices = @transform_1, window_bounds = array<i64: 32, 128>}, {transform_indices = @transform_2, window_bounds = array<i64: 32, 128>}, {transform_indices = @transform_3, window_bounds = array<i64: 1, 8, 128>}]} {
    %c0_i32 = arith.constant 0 : i32
    %0 = arith.cmpi eq, %arg1, %c0_i32 : i32
    %1 = arith.extui %0 : i1 to i32
    %c0_i32_0 = arith.constant 0 : i32
    %2 = arith.cmpi ne, %1, %c0_i32_0 : i32
    scf.if %2 {
      %cst_20 = arith.constant 0.000000e+00 : f32
      %82 = vector.broadcast %cst_20 : f32 to vector<8x128xf32>
      %c0_21 = arith.constant 0 : index
      %c0_22 = arith.constant 0 : index
      %c0_23 = arith.constant 0 : index
      %83 = vector.load %arg5[%c0_21, %c0_22, %c0_23] : memref<1x8x128xf32, #tpu.memory_space<vmem>>, vector<1x8x128xf32>
      %84 = vector.shape_cast %83 : vector<1x8x128xf32> to vector<8x128xf32>
      %85 = vector.shape_cast %82 : vector<8x128xf32> to vector<1x8x128xf32>
      tpu.vector_store %arg5[%c0_21, %c0_22, %c0_23], %85 {strides = array<i32>} : memref<1x8x128xf32, #tpu.memory_space<vmem>>, vector<1x8x128xf32>,
    } else {
    }
    %c0 = arith.constant 0 : index
    %c0_1 = arith.constant 0 : index
    %3 = vector.load %arg3[%c0, %c0_1] : memref<32x128xf32, #tpu.memory_space<vmem>>, vector<32x128xf32>
    %c0_2 = arith.constant 0 : index
    %c0_3 = arith.constant 0 : index
    %4 = vector.load %arg4[%c0_2, %c0_3] : memref<32x128xi8, #tpu.memory_space<vmem>>, vector<32x128xi8>
    %5 = arith.extsi %4 : vector<32x128xi8> to vector<32x128xi32>
    %c0_4 = arith.constant 0 : index
    %6 = memref.load %arg2[%c0_4] : memref<4xf32, #tpu.memory_space<smem>>
    %c1 = arith.constant 1 : index
    %7 = memref.load %arg2[%c1] : memref<4xf32, #tpu.memory_space<smem>>
    %c2 = arith.constant 2 : index
    %8 = memref.load %arg2[%c2] : memref<4xf32, #tpu.memory_space<smem>>
    %c3 = arith.constant 3 : index
    %9 = memref.load %arg2[%c3] : memref<4xf32, #tpu.memory_space<smem>>
    %10 = vector.broadcast %6 : f32 to vector<32x128xf32>
    %11 = arith.subf %10, %3 : vector<32x128xf32>
    %12 = arith.negf %11 : vector<32x128xf32>
    %13 = math.exp %12 : vector<32x128xf32>
    %cst = arith.constant 1.000000e+00 : f32
    %14 = vector.broadcast %cst : f32 to vector<32x128xf32>
    %15 = arith.addf %14, %13 : vector<32x128xf32>
    %16 = arith.divf %14, %15 : vector<32x128xf32>
    %17 = vector.broadcast %7 : f32 to vector<32x128xf32>
    %18 = arith.subf %17, %3 : vector<32x128xf32>
    %19 = arith.negf %18 : vector<32x128xf32>
    %20 = math.exp %19 : vector<32x128xf32>
    %cst_5 = arith.constant 1.000000e+00 : f32
    %21 = vector.broadcast %cst_5 : f32 to vector<32x128xf32>
    %22 = arith.addf %21, %20 : vector<32x128xf32>
    %23 = arith.divf %21, %22 : vector<32x128xf32>
    %24 = vector.broadcast %8 : f32 to vector<32x128xf32>
    %25 = arith.subf %24, %3 : vector<32x128xf32>
    %26 = arith.negf %25 : vector<32x128xf32>
    %27 = math.exp %26 : vector<32x128xf32>
    %cst_6 = arith.constant 1.000000e+00 : f32
    %28 = vector.broadcast %cst_6 : f32 to vector<32x128xf32>
    %29 = arith.addf %28, %27 : vector<32x128xf32>
    %30 = arith.divf %28, %29 : vector<32x128xf32>
    %31 = vector.broadcast %9 : f32 to vector<32x128xf32>
    %32 = arith.subf %31, %3 : vector<32x128xf32>
    %33 = arith.negf %32 : vector<32x128xf32>
    %34 = math.exp %33 : vector<32x128xf32>
    %cst_7 = arith.constant 1.000000e+00 : f32
    %35 = vector.broadcast %cst_7 : f32 to vector<32x128xf32>
    %36 = arith.addf %35, %34 : vector<32x128xf32>
    %37 = arith.divf %35, %36 : vector<32x128xf32>
    %38 = arith.subf %23, %16 : vector<32x128xf32>
    %c1_i32 = arith.constant 1 : i32
    %39 = vector.broadcast %c1_i32 : i32 to vector<32x128xi32>
    %40 = arith.cmpi eq, %5, %39 : vector<32x128xi32>
    %41 = arith.select %40, %38, %16 : vector<32x128xi1>, vector<32x128xf32>
    %42 = arith.subf %30, %23 : vector<32x128xf32>
    %c2_i32 = arith.constant 2 : i32
    %43 = vector.broadcast %c2_i32 : i32 to vector<32x128xi32>
    %44 = arith.cmpi eq, %5, %43 : vector<32x128xi32>
    %45 = arith.select %44, %42, %41 : vector<32x128xi1>, vector<32x128xf32>
    %46 = arith.subf %37, %30 : vector<32x128xf32>
    %c3_i32 = arith.constant 3 : i32
    %47 = vector.broadcast %c3_i32 : i32 to vector<32x128xi32>
    %48 = arith.cmpi eq, %5, %47 : vector<32x128xi32>
    %49 = arith.select %48, %46, %45 : vector<32x128xi1>, vector<32x128xf32>
    %cst_8 = arith.constant 1.000000e+00 : f32
    %50 = vector.broadcast %cst_8 : f32 to vector<32x128xf32>
    %51 = arith.subf %50, %37 : vector<32x128xf32>
    %c4_i32 = arith.constant 4 : i32
    %52 = vector.broadcast %c4_i32 : i32 to vector<32x128xi32>
    %53 = arith.cmpi eq, %5, %52 : vector<32x128xi32>
    %54 = arith.select %53, %51, %49 : vector<32x128xi1>, vector<32x128xf32>
    %cst_9 = arith.constant 9.99999993E-9 : f32
    %cst_10 = arith.constant 1.000000e+00 : f32
    %55 = vector.broadcast %cst_9 : f32 to vector<32x128xf32>
    %56 = arith.maximumf %55, %54 : vector<32x128xf32>
    %57 = vector.broadcast %cst_10 : f32 to vector<32x128xf32>
    %58 = arith.minimumf %57, %56 : vector<32x128xf32>
    %59 = math.log %58 : vector<32x128xf32>
    %c1_i32_11 = arith.constant 1 : i32
    %60 = arith.muli %arg0, %c1_i32_11 : i32
    %61 = arith.addi %60, %arg1 : i32
    %c32_i32 = arith.constant 32 : i32
    %62 = arith.muli %61, %c32_i32 : i32
    %63 = tpu.iota {dimensions = array<i32: 0>} : vector<32x128xi32>
    %64 = vector.broadcast %62 : i32 to vector<32x128xi32>
    %65 = arith.addi %64, %63 : vector<32x128xi32>
    %66 = tpu.iota {dimensions = array<i32: 1>} : vector<32x128xi32>
    %c16_i32 = arith.constant 16 : i32
    %67 = vector.broadcast %c16_i32 : i32 to vector<32x128xi32>
    %68 = arith.cmpi slt, %65, %67 : vector<32x128xi32>
    %c128_i32 = arith.constant 128 : i32
    %69 = vector.broadcast %c128_i32 : i32 to vector<32x128xi32>
    %70 = arith.cmpi slt, %66, %69 : vector<32x128xi32>
    %71 = arith.andi %68, %70 : vector<32x128xi1>
    %cst_12 = arith.constant 0.000000e+00 : f32
    %72 = vector.broadcast %cst_12 : f32 to vector<32x128xf32>
    %73 = arith.select %71, %59, %72 : vector<32x128xi1>, vector<32x128xf32>
    %74 = vector.shape_cast %73 : vector<32x128xf32> to vector<4x8x128xf32>
    %c0_13 = arith.constant 0 : index
    %c0_14 = arith.constant 0 : index
    %c0_15 = arith.constant 0 : index
    %75 = vector.load %arg5[%c0_13, %c0_14, %c0_15] : memref<1x8x128xf32, #tpu.memory_space<vmem>>, vector<1x8x128xf32>
    %76 = vector.shape_cast %75 : vector<1x8x128xf32> to vector<8x128xf32>
    %cst_16 = arith.constant dense<0.000000e+00> : vector<8x128xf32>
    %77 = vector.multi_reduction <add>, %74, %cst_16 [0] : vector<4x8x128xf32> to vector<8x128xf32>
    %78 = arith.addf %76, %77 : vector<8x128xf32>
    %c0_17 = arith.constant 0 : index
    %c0_18 = arith.constant 0 : index
    %c0_19 = arith.constant 0 : index
    %79 = vector.load %arg5[%c0_17, %c0_18, %c0_19] : memref<1x8x128xf32, #tpu.memory_space<vmem>>, vector<1x8x128xf32>
    %80 = vector.shape_cast %79 : vector<1x8x128xf32> to vector<8x128xf32>
    %81 = vector.shape_cast %78 : vector<8x128xf32> to vector<1x8x128xf32>
    tpu.vector_store %arg5[%c0_17, %c0_18, %c0_19], %81 {strides = array<i32>} : memref<1x8x128xf32, #tpu.memory_space<vmem>>, vector<1x8x128xf32>,
    return
  }
  func.func @transform_0(%arg0: i32, %arg1: i32) -> i32 {
    %c0_i32 = arith.constant 0 : i32
    %c0_i32_0 = arith.constant 0 : i32
    return %c0_i32 : i32
  }
  func.func @transform_1(%arg0: i32, %arg1: i32) -> (i32, i32) {
    %c1_i32 = arith.constant 1 : i32
    %0 = arith.muli %arg0, %c1_i32 : i32
    %1 = arith.addi %0, %arg1 : i32
    %c0_i32 = arith.constant 0 : i32
    %c0_i32_0 = arith.constant 0 : i32
    return %1, %c0_i32 : i32, i32
  }
  func.func @transform_2(%arg0: i32, %arg1: i32) -> (i32, i32) {
    %c1_i32 = arith.constant 1 : i32
    %0 = arith.muli %arg0, %c1_i32 : i32
    %1 = arith.addi %0, %arg1 : i32
    %c0_i32 = arith.constant 0 : i32
    %c0_i32_0 = arith.constant 0 : i32
    return %1, %c0_i32 : i32, i32
  }
  func.func @transform_3(%arg0: i32, %arg1: i32) -> (i32, i32, i32) {
    %c0_i32 = arith.constant 0 : i32
    %c0_i32_0 = arith.constant 0 : i32
    %c0_i32_1 = arith.constant 0 : i32
    return %arg0, %c0_i32, %c0_i32_0 : i32, i32, i32
  }
}

</mosaic_0001>

<llo_original>
// kernel: tpu_custom_call.1
$region0: #{tpu_custom_call.1}
  #allocation0 [shape = 'u32[]', space=smem, size = 0x4, offset = 0x4, fixed_abs, tag = 'smem constant byte address 0x4 - core index']
  #allocation1 [shape = 'u32[72,128]{1,0:T(1,128)}', space=vmem, size = 0x9000, scoped, tag = 'internal scratch']
  %s0 = inlined_call_operand.hbm [shape: f32[4], index: 0, kind: input, shape index: {}]
  %s1 = inlined_call_operand.hbm [shape: f32[32,128], index: 1, kind: input, shape index: {}]
  %s2 = inlined_call_operand.hbm [shape: s8[32,128], index: 2, kind: input, shape index: {}]
  %s3 = inlined_call_operand.hbm [shape: f32[1,8,128], index: 3, kind: output, shape index: {}]
  %s4 = sld [smem:[#allocation0]]
  $region38: #{tpu_custom_call.1} parent=0
    _
  %s6 = ssub.s32 1, %s4
  %s7 = scalar_select 0, %s6, %s4
  $region1: #{tpu_custom_call.1} parent=0
    #allocation2 [shape = 'u8[512]{0}', space=smem, size = 0x200, scoped, tag = 'input window, operand 0, single buffered']
    #allocation3 [shape = 's32[1]{0}', space=sflag, size = 0x4, scoped, tag = 'scoped memory for tpu_custom_call.1']
    #allocation4 [shape = 's32[1]{0}', space=sflag, size = 0x4, scoped, tag = 'scoped memory for tpu_custom_call.1']
    #allocation5 [shape = 's32[1]{0}', space=sflag, size = 0x4, scoped, tag = 'scoped memory for tpu_custom_call.1']
    #allocation6 [shape = 'u8[16384]{0}', space=vmem, size = 0x4000, scoped, tag = 'input window, operand 1, single buffered']
    #allocation7 [shape = 'u8[4096]{0}', space=vmem, size = 0x1000, scoped, tag = 'input window, operand 2, single buffered']
    #allocation8 [shape = 's32[1]{0}', space=sflag, size = 0x4, scoped, tag = 'scoped memory for tpu_custom_call.1']
    #allocation9 [shape = 'u8[4096]{0}', space=vmem, size = 0x1000, scoped, tag = 'output window, operand 0, single buffered']
    %8 = vsyncpa [#allocation5], 0
    %9 = vsyncpa [#allocation3], 0
    %10 = vsyncpa [#allocation8], 0
    %11 = vsyncpa [#allocation4], 0
    // Predicated region
    $region2: #{tpu_custom_call.1} parent=1 // pred_check
      _
    $region3: #{tpu_custom_call.1} parent=1 // pred_check_branch
      %13 = sbr.rel (0) target = $region5
    $region4: #{tpu_custom_call.1} parent=1 // pred_region
      %15 = vsyncadd [#allocation5], 0
      %s17 = sshll.u32 %s0, 4
      %s18 = int_to_ptr.hbm [resolvable:$true] %s17
      %20 = dma.hbm_to_smem %s18, 16, [#allocation2], [#allocation5]
    $region5: #{tpu_custom_call.1} parent=1 // pred_fallthru
      _
    // Predicated region
    $region6: #{tpu_custom_call.1} parent=1 // pred_check
      _
    $region7: #{tpu_custom_call.1} parent=1 // pred_check_branch
      %22 = sbr.rel (0) target = $region9
    $region8: #{tpu_custom_call.1} parent=1 // pred_region
      %s23 = sadd.s32 0, 0
      %s24 = smul.u32 4, %s23
      %26 = vsyncadd [#allocation3], 0
      %s27 = smul.addr %s24, 8
      %s28 = scalar_lea.hbm %s1, %s27
      %s29 = sshll.u32 %s28, 4
      %s30 = int_to_ptr.hbm [resolvable:$true] %s29
      %s31 = sshll.u32 [#allocation6], 4
      %s32 = int_to_ptr.vmem [resolvable:$true] %s31
      %37 = dma.hbm_to_vmem [thread:$0]  %s30, 512, %s32, [#allocation3], 128, 128, 8
    $region9: #{tpu_custom_call.1} parent=1 // pred_fallthru
      _
    // Predicated region
    $region10: #{tpu_custom_call.1} parent=1 // pred_check
      _
    $region11: #{tpu_custom_call.1} parent=1 // pred_check_branch
      %39 = sbr.rel (0) target = $region13
    $region12: #{tpu_custom_call.1} parent=1 // pred_region
      %s40 = sadd.s32 0, 0
      %42 = vsyncadd [#allocation8], 0
      %s43 = smul.addr %s40, 8
      %s44 = scalar_lea.hbm %s2, %s43
      %s46 = sshll.u32 %s44, 4
      %s47 = int_to_ptr.hbm [resolvable:$true] %s46
      %s48 = sshll.u32 [#allocation7], 4
      %s49 = int_to_ptr.vmem [resolvable:$true] %s48
      %51 = dma.hbm_to_vmem [thread:$0]  %s47, 128, %s49, [#allocation8]
    $region13: #{tpu_custom_call.1} parent=1 // pred_fallthru
      _
    // Predicated region
    $region14: #{tpu_custom_call.1} parent=1 // pred_check
      _
    $region15: #{tpu_custom_call.1} parent=1 // pred_check_branch
      %53 = sbr.rel (0) target = $region17
    $region16: #{tpu_custom_call.1} parent=1 // pred_region
      %55 = dma.done [#allocation5], 16
    $region17: #{tpu_custom_call.1} parent=1 // pred_fallthru
      _
    // Predicated region
    $region18: #{tpu_custom_call.1} parent=1 // pred_check
      _
    $region19: #{tpu_custom_call.1} parent=1 // pred_check_branch
      %57 = sbr.rel (0) target = $region21
    $region20: #{tpu_custom_call.1} parent=1 // pred_region
      %59 = dma.done [#allocation3], 512
    $region21: #{tpu_custom_call.1} parent=1 // pred_fallthru
      _
    // Predicated region
    $region22: #{tpu_custom_call.1} parent=1 // pred_check
      _
    $region23: #{tpu_custom_call.1} parent=1 // pred_check_branch
      %61 = sbr.rel (0) target = $region25
    $region24: #{tpu_custom_call.1} parent=1 // pred_region
      %63 = dma.done [#allocation8], 128
    $region25: #{tpu_custom_call.1} parent=1 // pred_fallthru
      _
    %64 = sfence
    %s65 = sadd.s32 0, 0
    %s66 = smul.u32 4, %s65
    %s67 = sadd.s32 0, 0
    %p68 = scmp.eq.s32.totalorder 0, 0
    // Predicated region
    $region26: #{tpu_custom_call.1} parent=1 // pred_check
      %p69 = pneg %p68
    $region27: #{tpu_custom_call.1} parent=1 // pred_check_branch
      %71 = sbr.rel (%p69) target = $region29
    $region28: #{tpu_custom_call.1} parent=1 // pred_region
      %72 = vst [vmem:[#allocation9] sm:$0xff] 0.0
    $region29: #{tpu_custom_call.1} parent=1 // pred_fallthru
      _
    %v73 = vld [vmem:[#allocation6] sm:$0xff]
    %v74 = vld [vmem:[#allocation6 + $0x8] sm:$0xff]
    %v75 = vld [vmem:[#allocation6 + $0x10] sm:$0xff]
    %v76 = vld [vmem:[#allocation6 + $0x18] sm:$0xff]
    %v77 = vld [vmem:[#allocation7] sm:$0xff]
    %v78 = vunpack.c.0.s8 %v77
    %v79 = vunpack.c.1.s8 %v77
    %v80 = vunpack.c.2.s8 %v77
    %v81 = vunpack.c.3.s8 %v77
    %s82 = sld [smem:[#allocation2]]
    %s83 = sld [smem:[#allocation2 + $0x1]]
    %s84 = sld [smem:[#allocation2 + $0x2]]
    %s85 = sld [smem:[#allocation2 + $0x3]]
    %v86 = vstv %s82
    %v87 = vsub.f32 %v86, %v73
    %v88 = vsub.f32 %v86, %v74
    %v89 = vsub.f32 %v86, %v75
    %v90 = vsub.f32 %v86, %v76
    %v91 = vxor.u32 %v87, 2147483648
    %v92 = vxor.u32 %v88, 2147483648
    %v93 = vxor.u32 %v89, 2147483648
    %v94 = vxor.u32 %v90, 2147483648
    %v95 = vmul.f32 %v91, 1.442695
    %v96 = vpow.pop %v95
    %v97 = vmul.f32 %v92, 1.442695
    %v98 = vpow.pop %v97
    %v99 = vmul.f32 %v93, 1.442695
    %v100 = vpow.pop %v99
    %v101 = vmul.f32 %v94, 1.442695
    %v102 = vpow.pop %v101
    %v103 = vadd.f32 %v96, 1.0
    %v104 = vadd.f32 %v98, 1.0
    %v105 = vadd.f32 %v100, 1.0
    %v106 = vadd.f32 %v102, 1.0
    %v107 = vrcp.pop %v103
    %v108 = vmul.f32 %v103, %v107
    %v109 = vsub.f32 1.0, %v108
    %v110 = vmul.f32 %v107, %v109
    %v111 = vadd.f32 %v107, %v110
    %vm112 = vweird.f32 %v103
    %vm113 = vweird.f32 %v107
    %vm114 = vmor %vm112, %vm113
    %v115 = vsel %vm114, %v107, %v111
    %v116 = vand.u32 2147483647, %v103
    %vm117 = vcmp.eq.f32.partialorder %v116, 8.507059e+37
    %v118 = vand.u32 %v103, 2147483648
    %v119 = vor.u32 1.1754944e-38, %v118
    %v120 = vsel %vm117, %v119, %v115
    %v121 = vmul.f32 1.0, %v120
    %v122 = vrcp.pop %v104
    %v123 = vmul.f32 %v104, %v122
    %v124 = vsub.f32 1.0, %v123
    %v125 = vmul.f32 %v122, %v124
    %v126 = vadd.f32 %v122, %v125
    %vm127 = vweird.f32 %v104
    %vm128 = vweird.f32 %v122
    %vm129 = vmor %vm127, %vm128
    %v130 = vsel %vm129, %v122, %v126
    %v131 = vand.u32 2147483647, %v104
    %vm132 = vcmp.eq.f32.partialorder %v131, 8.507059e+37
    %v133 = vand.u32 %v104, 2147483648
    %v134 = vor.u32 1.1754944e-38, %v133
    %v135 = vsel %vm132, %v134, %v130
    %v136 = vmul.f32 1.0, %v135
    %v137 = vrcp.pop %v105
    %v138 = vmul.f32 %v105, %v137
    %v139 = vsub.f32 1.0, %v138
    %v140 = vmul.f32 %v137, %v139
    %v141 = vadd.f32 %v137, %v140
    %vm142 = vweird.f32 %v105
    %vm143 = vweird.f32 %v137
    %vm144 = vmor %vm142, %vm143
    %v145 = vsel %vm144, %v137, %v141
    %v146 = vand.u32 2147483647, %v105
    %vm147 = vcmp.eq.f32.partialorder %v146, 8.507059e+37
    %v148 = vand.u32 %v105, 2147483648
    %v149 = vor.u32 1.1754944e-38, %v148
    %v150 = vsel %vm147, %v149, %v145
    %v151 = vmul.f32 1.0, %v150
    %v152 = vrcp.pop %v106
    %v153 = vmul.f32 %v106, %v152
    %v154 = vsub.f32 1.0, %v153
    %v155 = vmul.f32 %v152, %v154
    %v156 = vadd.f32 %v152, %v155
    %vm157 = vweird.f32 %v106
    %vm158 = vweird.f32 %v152
    %vm159 = vmor %vm157, %vm158
    %v160 = vsel %vm159, %v152, %v156
    %v161 = vand.u32 2147483647, %v106
    %vm162 = vcmp.eq.f32.partialorder %v161, 8.507059e+37
    %v163 = vand.u32 %v106, 2147483648
    %v164 = vor.u32 1.1754944e-38, %v163
    %v165 = vsel %vm162, %v164, %v160
    %v166 = vmul.f32 1.0, %v165
    %v167 = vstv %s83
    %v168 = vsub.f32 %v167, %v73
    %v169 = vsub.f32 %v167, %v74
    %v170 = vsub.f32 %v167, %v75
    %v171 = vsub.f32 %v167, %v76
    %v172 = vxor.u32 %v168, 2147483648
    %v173 = vxor.u32 %v169, 2147483648
    %v174 = vxor.u32 %v170, 2147483648
    %v175 = vxor.u32 %v171, 2147483648
    %v176 = vmul.f32 %v172, 1.442695
    %v177 = vpow.pop %v176
    %v178 = vmul.f32 %v173, 1.442695
    %v179 = vpow.pop %v178
    %v180 = vmul.f32 %v174, 1.442695
    %v181 = vpow.pop %v180
    %v182 = vmul.f32 %v175, 1.442695
    %v183 = vpow.pop %v182
    %v184 = vadd.f32 %v177, 1.0
    %v185 = vadd.f32 %v179, 1.0
    %v186 = vadd.f32 %v181, 1.0
    %v187 = vadd.f32 %v183, 1.0
    %v188 = vrcp.pop %v184
    %v189 = vmul.f32 %v184, %v188
    %v190 = vsub.f32 1.0, %v189
    %v191 = vmul.f32 %v188, %v190
    %v192 = vadd.f32 %v188, %v191
    %vm193 = vweird.f32 %v184
    %vm194 = vweird.f32 %v188
    %vm195 = vmor %vm193, %vm194
    %v196 = vsel %vm195, %v188, %v192
    %v197 = vand.u32 2147483647, %v184
    %vm198 = vcmp.eq.f32.partialorder %v197, 8.507059e+37
    %v199 = vand.u32 %v184, 2147483648
    %v200 = vor.u32 1.1754944e-38, %v199
    %v201 = vsel %vm198, %v200, %v196
    %v202 = vmul.f32 1.0, %v201
    %v203 = vrcp.pop %v185
    %v204 = vmul.f32 %v185, %v203
    %v205 = vsub.f32 1.0, %v204
    %v206 = vmul.f32 %v203, %v205
    %v207 = vadd.f32 %v203, %v206
    %vm208 = vweird.f32 %v185
    %vm209 = vweird.f32 %v203
    %vm210 = vmor %vm208, %vm209
    %v211 = vsel %vm210, %v203, %v207
    %v212 = vand.u32 2147483647, %v185
    %vm213 = vcmp.eq.f32.partialorder %v212, 8.507059e+37
    %v214 = vand.u32 %v185, 2147483648
    %v215 = vor.u32 1.1754944e-38, %v214
    %v216 = vsel %vm213, %v215, %v211
    %v217 = vmul.f32 1.0, %v216
    %v218 = vrcp.pop %v186
    %v219 = vmul.f32 %v186, %v218
    %v220 = vsub.f32 1.0, %v219
    %v221 = vmul.f32 %v218, %v220
    %v222 = vadd.f32 %v218, %v221
    %vm223 = vweird.f32 %v186
    %vm224 = vweird.f32 %v218
    %vm225 = vmor %vm223, %vm224
    %v226 = vsel %vm225, %v218, %v222
    %v227 = vand.u32 2147483647, %v186
    %vm228 = vcmp.eq.f32.partialorder %v227, 8.507059e+37
    %v229 = vand.u32 %v186, 2147483648
    %v230 = vor.u32 1.1754944e-38, %v229
    %v231 = vsel %vm228, %v230, %v226
    %v232 = vmul.f32 1.0, %v231
    %v233 = vrcp.pop %v187
    %v234 = vmul.f32 %v187, %v233
    %v235 = vsub.f32 1.0, %v234
    %v236 = vmul.f32 %v233, %v235
    %v237 = vadd.f32 %v233, %v236
    %vm238 = vweird.f32 %v187
    %vm239 = vweird.f32 %v233
    %vm240 = vmor %vm238, %vm239
    %v241 = vsel %vm240, %v233, %v237
    %v242 = vand.u32 2147483647, %v187
    %vm243 = vcmp.eq.f32.partialorder %v242, 8.507059e+37
    %v244 = vand.u32 %v187, 2147483648
    %v245 = vor.u32 1.1754944e-38, %v244
    %v246 = vsel %vm243, %v245, %v241
    %v247 = vmul.f32 1.0, %v246
    %v248 = vstv %s84
    %v249 = vsub.f32 %v248, %v73
    %v250 = vsub.f32 %v248, %v74
    %v251 = vsub.f32 %v248, %v75
    %v252 = vsub.f32 %v248, %v76
    %v253 = vxor.u32 %v249, 2147483648
    %v254 = vxor.u32 %v250, 2147483648
    %v255 = vxor.u32 %v251, 2147483648
    %v256 = vxor.u32 %v252, 2147483648
    %v257 = vmul.f32 %v253, 1.442695
    %v258 = vpow.pop %v257
    %v259 = vmul.f32 %v254, 1.442695
    %v260 = vpow.pop %v259
    %v261 = vmul.f32 %v255, 1.442695
    %v262 = vpow.pop %v261
    %v263 = vmul.f32 %v256, 1.442695
    %v264 = vpow.pop %v263
    %v265 = vadd.f32 %v258, 1.0
    %v266 = vadd.f32 %v260, 1.0
    %v267 = vadd.f32 %v262, 1.0
    %v268 = vadd.f32 %v264, 1.0
    %v269 = vrcp.pop %v265
    %v270 = vmul.f32 %v265, %v269
    %v271 = vsub.f32 1.0, %v270
    %v272 = vmul.f32 %v269, %v271
    %v273 = vadd.f32 %v269, %v272
    %vm274 = vweird.f32 %v265
    %vm275 = vweird.f32 %v269
    %vm276 = vmor %vm274, %vm275
    %v277 = vsel %vm276, %v269, %v273
    %v278 = vand.u32 2147483647, %v265
    %vm279 = vcmp.eq.f32.partialorder %v278, 8.507059e+37
    %v280 = vand.u32 %v265, 2147483648
    %v281 = vor.u32 1.1754944e-38, %v280
    %v282 = vsel %vm279, %v281, %v277
    %v283 = vmul.f32 1.0, %v282
    %v284 = vrcp.pop %v266
    %v285 = vmul.f32 %v266, %v284
    %v286 = vsub.f32 1.0, %v285
    %v287 = vmul.f32 %v284, %v286
    %v288 = vadd.f32 %v284, %v287
    %vm289 = vweird.f32 %v266
    %vm290 = vweird.f32 %v284
    %vm291 = vmor %vm289, %vm290
    %v292 = vsel %vm291, %v284, %v288
    %v293 = vand.u32 2147483647, %v266
    %vm294 = vcmp.eq.f32.partialorder %v293, 8.507059e+37
    %v295 = vand.u32 %v266, 2147483648
    %v296 = vor.u32 1.1754944e-38, %v295
    %v297 = vsel %vm294, %v296, %v292
    %v298 = vmul.f32 1.0, %v297
    %v299 = vrcp.pop %v267
    %v300 = vmul.f32 %v267, %v299
    %v301 = vsub.f32 1.0, %v300
    %v302 = vmul.f32 %v299, %v301
    %v303 = vadd.f32 %v299, %v302
    %vm304 = vweird.f32 %v267
    %vm305 = vweird.f32 %v299
    %vm306 = vmor %vm304, %vm305
    %v307 = vsel %vm306, %v299, %v303
    %v308 = vand.u32 2147483647, %v267
    %vm309 = vcmp.eq.f32.partialorder %v308, 8.507059e+37
    %v310 = vand.u32 %v267, 2147483648
    %v311 = vor.u32 1.1754944e-38, %v310
    %v312 = vsel %vm309, %v311, %v307
    %v313 = vmul.f32 1.0, %v312
    %v314 = vrcp.pop %v268
    %v315 = vmul.f32 %v268, %v314
    %v316 = vsub.f32 1.0, %v315
    %v317 = vmul.f32 %v314, %v316
    %v318 = vadd.f32 %v314, %v317
    %vm319 = vweird.f32 %v268
    %vm320 = vweird.f32 %v314
    %vm321 = vmor %vm319, %vm320
    %v322 = vsel %vm321, %v314, %v318
    %v323 = vand.u32 2147483647, %v268
    %vm324 = vcmp.eq.f32.partialorder %v323, 8.507059e+37
    %v325 = vand.u32 %v268, 2147483648
    %v326 = vor.u32 1.1754944e-38, %v325
    %v327 = vsel %vm324, %v326, %v322
    %v328 = vmul.f32 1.0, %v327
    %v329 = vstv %s85
    %v330 = vsub.f32 %v329, %v73
    %v331 = vsub.f32 %v329, %v74
    %v332 = vsub.f32 %v329, %v75
    %v333 = vsub.f32 %v329, %v76
    %v334 = vxor.u32 %v330, 2147483648
    %v335 = vxor.u32 %v331, 2147483648
    %v336 = vxor.u32 %v332, 2147483648
    %v337 = vxor.u32 %v333, 2147483648
    %v338 = vmul.f32 %v334, 1.442695
    %v339 = vpow.pop %v338
    %v340 = vmul.f32 %v335, 1.442695
    %v341 = vpow.pop %v340
    %v342 = vmul.f32 %v336, 1.442695
    %v343 = vpow.pop %v342
    %v344 = vmul.f32 %v337, 1.442695
    %v345 = vpow.pop %v344
    %v346 = vadd.f32 %v339, 1.0
    %v347 = vadd.f32 %v341, 1.0
    %v348 = vadd.f32 %v343, 1.0
    %v349 = vadd.f32 %v345, 1.0
    %v350 = vrcp.pop %v346
    %v351 = vmul.f32 %v346, %v350
    %v352 = vsub.f32 1.0, %v351
    %v353 = vmul.f32 %v350, %v352
    %v354 = vadd.f32 %v350, %v353
    %vm355 = vweird.f32 %v346
    %vm356 = vweird.f32 %v350
    %vm357 = vmor %vm355, %vm356
    %v358 = vsel %vm357, %v350, %v354
    %v359 = vand.u32 2147483647, %v346
    %vm360 = vcmp.eq.f32.partialorder %v359, 8.507059e+37
    %v361 = vand.u32 %v346, 2147483648
    %v362 = vor.u32 1.1754944e-38, %v361
    %v363 = vsel %vm360, %v362, %v358
    %v364 = vmul.f32 1.0, %v363
    %v365 = vrcp.pop %v347
    %v366 = vmul.f32 %v347, %v365
    %v367 = vsub.f32 1.0, %v366
    %v368 = vmul.f32 %v365, %v367
    %v369 = vadd.f32 %v365, %v368
    %vm370 = vweird.f32 %v347
    %vm371 = vweird.f32 %v365
    %vm372 = vmor %vm370, %vm371
    %v373 = vsel %vm372, %v365, %v369
    %v374 = vand.u32 2147483647, %v347
    %vm375 = vcmp.eq.f32.partialorder %v374, 8.507059e+37
    %v376 = vand.u32 %v347, 2147483648
    %v377 = vor.u32 1.1754944e-38, %v376
    %v378 = vsel %vm375, %v377, %v373
    %v379 = vmul.f32 1.0, %v378
    %v380 = vrcp.pop %v348
    %v381 = vmul.f32 %v348, %v380
    %v382 = vsub.f32 1.0, %v381
    %v383 = vmul.f32 %v380, %v382
    %v384 = vadd.f32 %v380, %v383
    %vm385 = vweird.f32 %v348
    %vm386 = vweird.f32 %v380
    %vm387 = vmor %vm385, %vm386
    %v388 = vsel %vm387, %v380, %v384
    %v389 = vand.u32 2147483647, %v348
    %vm390 = vcmp.eq.f32.partialorder %v389, 8.507059e+37
    %v391 = vand.u32 %v348, 2147483648
    %v392 = vor.u32 1.1754944e-38, %v391
    %v393 = vsel %vm390, %v392, %v388
    %v394 = vmul.f32 1.0, %v393
    %v395 = vrcp.pop %v349
    %v396 = vmul.f32 %v349, %v395
    %v397 = vsub.f32 1.0, %v396
    %v398 = vmul.f32 %v395, %v397
    %v399 = vadd.f32 %v395, %v398
    %vm400 = vweird.f32 %v349
    %vm401 = vweird.f32 %v395
    %vm402 = vmor %vm400, %vm401
    %v403 = vsel %vm402, %v395, %v399
    %v404 = vand.u32 2147483647, %v349
    %vm405 = vcmp.eq.f32.partialorder %v404, 8.507059e+37
    %v406 = vand.u32 %v349, 2147483648
    %v407 = vor.u32 1.1754944e-38, %v406
    %v408 = vsel %vm405, %v407, %v403
    %v409 = vmul.f32 1.0, %v408
    %v410 = vsub.f32 %v202, %v121
    %v411 = vsub.f32 %v217, %v136
    %v412 = vsub.f32 %v232, %v151
    %v413 = vsub.f32 %v247, %v166
    %vm414 = vcmp.eq.s32.totalorder %v78, 1
    %vm415 = vcmp.eq.s32.totalorder %v79, 1
    %vm416 = vcmp.eq.s32.totalorder %v80, 1
    %vm417 = vcmp.eq.s32.totalorder %v81, 1
    %v418 = vsel %vm414, %v410, %v121
    %v419 = vsel %vm415, %v411, %v136
    %v420 = vsel %vm416, %v412, %v151
    %v421 = vsel %vm417, %v413, %v166
    %v422 = vsub.f32 %v283, %v202
    %v423 = vsub.f32 %v298, %v217
    %v424 = vsub.f32 %v313, %v232
    %v425 = vsub.f32 %v328, %v247
    %vm426 = vcmp.eq.s32.totalorder %v78, 2
    %vm427 = vcmp.eq.s32.totalorder %v79, 2
    %vm428 = vcmp.eq.s32.totalorder %v80, 2
    %vm429 = vcmp.eq.s32.totalorder %v81, 2
    %v430 = vsel %vm426, %v422, %v418
    %v431 = vsel %vm427, %v423, %v419
    %v432 = vsel %vm428, %v424, %v420
    %v433 = vsel %vm429, %v425, %v421
    %v434 = vsub.f32 %v364, %v283
    %v435 = vsub.f32 %v379, %v298
    %v436 = vsub.f32 %v394, %v313
    %v437 = vsub.f32 %v409, %v328
    %vm438 = vcmp.eq.s32.totalorder %v78, 3
    %vm439 = vcmp.eq.s32.totalorder %v79, 3
    %vm440 = vcmp.eq.s32.totalorder %v80, 3
    %vm441 = vcmp.eq.s32.totalorder %v81, 3
    %v442 = vsel %vm438, %v434, %v430
    %v443 = vsel %vm439, %v435, %v431
    %v444 = vsel %vm440, %v436, %v432
    %v445 = vsel %vm441, %v437, %v433
    %v446 = vsub.f32 1.0, %v364
    %v447 = vsub.f32 1.0, %v379
    %v448 = vsub.f32 1.0, %v394
    %v449 = vsub.f32 1.0, %v409
    %vm450 = vcmp.eq.s32.totalorder %v78, 4
    %vm451 = vcmp.eq.s32.totalorder %v79, 4
    %vm452 = vcmp.eq.s32.totalorder %v80, 4
    %vm453 = vcmp.eq.s32.totalorder %v81, 4
    %v454 = vsel %vm450, %v446, %v442
    %v455 = vsel %vm451, %v447, %v443
    %v456 = vsel %vm452, %v448, %v444
    %v457 = vsel %vm453, %v449, %v445
    %v458 = vmax.f32 %v454, 1e-08
    %v459 = vmax.f32 %v455, 1e-08
    %v460 = vmax.f32 %v456, 1e-08
    %v461 = vmax.f32 %v457, 1e-08
    %v462 = vmin.f32 %v458, 1.0
    %v463 = vmin.f32 %v459, 1.0
    %v464 = vmin.f32 %v460, 1.0
    %v465 = vmin.f32 %v461, 1.0
    %v466 = vlog2.pop %v462
    %v467 = vmul.f32 %v466, 0.6931472
    %v468 = vlog2.pop %v463
    %v469 = vmul.f32 %v468, 0.6931472
    %v470 = vlog2.pop %v464
    %v471 = vmul.f32 %v470, 0.6931472
    %v472 = vlog2.pop %v465
    %v473 = vmul.f32 %v472, 0.6931472
    %s474 = sadd.s32 0, 0
    %s475 = smul.u32 %s474, 32
    %v476 = vlaneseq
    %v477 = vshrl.u32 %v476, 7
    %v478 = vadd.s32 %v477, 8
    %v479 = vadd.s32 %v477, 16
    %v480 = vadd.s32 %v477, 24
    %v481 = vstv %s475
    %v482 = vadd.s32 %v481, %v477
    %v483 = vadd.s32 %v481, %v478
    %v484 = vadd.s32 %v481, %v479
    %v485 = vadd.s32 %v481, %v480
    %v486 = vlaneseq
    %v487 = vand.u32 %v486, 127
    %vm488 = vcmp.lt.s32.totalorder %v482, 16
    %vm489 = vcmp.lt.s32.totalorder %v483, 16
    %vm490 = vcmp.lt.s32.totalorder %v484, 16
    %vm491 = vcmp.lt.s32.totalorder %v485, 16
    %vm492 = vcmp.lt.s32.totalorder %v487, 128
    %vm493 = vmand %vm488, %vm492
    %vm494 = vmand %vm489, %vm492
    %vm495 = vmand %vm490, %vm492
    %vm496 = vmand %vm491, %vm492
    %v497 = vsel %vm493, %v467, 0.0
    %v498 = vsel %vm494, %v469, 0.0
    %v499 = vsel %vm495, %v471, 0.0
    %v500 = vsel %vm496, %v473, 0.0
    %v501 = vld [vmem:[#allocation9] sm:$0xff]
    %v502 = vadd.f32 %v497, %v498
    %v503 = vadd.f32 %v502, %v499
    %v504 = vadd.f32 %v503, %v500
    %v505 = vadd.f32 %v501, %v504
    %506 = vst [vmem:[#allocation9] sm:$0xff] %v505
    // Predicated region
    $region30: #{tpu_custom_call.1} parent=1 // pred_check
      _
    $region31: #{tpu_custom_call.1} parent=1 // pred_check_branch
      %508 = sbr.rel (0) target = $region33
    $region32: #{tpu_custom_call.1} parent=1 // pred_region
      %510 = vsyncadd [#allocation4], 0
      %s512 = sshll.u32 [#allocation9], 4
      %s513 = int_to_ptr.vmem [resolvable:$true] %s512
      %s514 = sshll.u32 %s3, 4
      %s515 = int_to_ptr.hbm [resolvable:$true] %s514
      %517 = dma.vmem_to_hbm [thread:$0]  %s513, 128, %s515, [#allocation4]
    $region33: #{tpu_custom_call.1} parent=1 // pred_fallthru
      _
    // Predicated region
    $region34: #{tpu_custom_call.1} parent=1 // pred_check
      _
    $region35: #{tpu_custom_call.1} parent=1 // pred_check_branch
      %519 = sbr.rel (0) target = $region37
    $region36: #{tpu_custom_call.1} parent=1 // pred_region
      %521 = dma.done [#allocation4], 128
    $region37: #{tpu_custom_call.1} parent=1 // pred_fallthru
      _
    %522 = vsyncpa [#allocation3], 1
    %523 = vsyncpa [#allocation8], 1
    %524 = vsyncpa [#allocation4], 1
    %525 = vsyncpa [#allocation5], 1

</llo_original>
